<compile_context>
chip_gen: v7x
topology: tpu7x:2x2x1
jax: 0.10.0
libtpu: 0.0.40
codegen_flags: <defaults>
</compile_context>

<pallas_src>
import jax
import jax.numpy as jnp
from jax import lax
from jax.experimental import pallas as pl
from jax.experimental.pallas import tpu as pltpu


def _round_up(x: int, m: int) -> int:
    return (x + m - 1) // m * m


def dan_kernel(text_ref,                       # [T_pad, 1]   int32 token ids (pad rows = 0)
               starts_ref, ends_ref,           # [B_TILE, 1]  int32 bag [start, end)
               emb_ref,                        # [V_TILE, D]  bf16 embedding chunk
               w1_ref, b1_ref,                 # [D, H1] bf16, [1, H1] f32
               w2_ref, b2_ref,                 # [H1, H2] bf16, [1, H2] f32
               w3_ref, b3_ref,                 # [H2, C_pad] bf16, [1, C_pad] f32
               out_ref,                        # [B_TILE, C_pad] f32
               acc_ref):                       # VMEM scratch [B_TILE, D] f32
    k = pl.program_id(1)
    nk = pl.num_programs(1)
    B_TILE = out_ref.shape[0]
    T_pad = text_ref.shape[0]
    V_TILE = emb_ref.shape[0]

    @pl.when(k == 0)
    def _():
        acc_ref[...] = jnp.zeros_like(acc_ref)

    starts = starts_ref[...]                                    # [B_TILE, 1] i32
    ends = ends_ref[...]                                        # [B_TILE, 1] i32

    # Bag-assignment matrix (0/1, exact in bf16):  assign[b, t] = 1 iff token t in bag b.
    t_iota = lax.broadcasted_iota(jnp.int32, (B_TILE, T_pad), 1)
    assign = ((t_iota >= starts) & (t_iota < ends)).astype(jnp.bfloat16)

    # One-hot over THIS vocab chunk only:  onehot[t, v] = (text[t] == k*V_TILE + v).
    v_iota = lax.broadcasted_iota(jnp.int32, (T_pad, V_TILE), 1) + k * V_TILE
    onehot = (v_iota == text_ref[...]).astype(jnp.bfloat16)

    # Per-bag token histogram for this chunk (integer counts, exact in f32 accumulation),
    # then accumulate the partial bag-sum of embedding rows into the f32 scratch.
    hist = jnp.dot(assign, onehot, preferred_element_type=jnp.float32)      # [B_TILE, V_TILE]
    acc_ref[...] += jnp.dot(hist.astype(jnp.bfloat16), emb_ref[...],
                            preferred_element_type=jnp.float32)             # [B_TILE, D]

    @pl.when(k == nk - 1)
    def _():
        # EmbeddingBag mean: scale the f32 accumulator by 1/count (empty bags -> zero row).
        counts = (ends - starts).astype(jnp.float32)
        inv_counts = 1.0 / jnp.maximum(counts, 1.0)
        h0 = acc_ref[...] * inv_counts                                       # [B_TILE, D]

        # Dropout: identity (eval mode).

        # MLP on the bf16 MXU with f32 accumulation; single full-tile lane-dense store.
        h1 = jnp.maximum(
            jnp.dot(h0.astype(jnp.bfloat16), w1_ref[...],
                    preferred_element_type=jnp.float32) + b1_ref[...], 0.0)
        h2 = jnp.maximum(
            jnp.dot(h1.astype(jnp.bfloat16), w2_ref[...],
                    preferred_element_type=jnp.float32) + b2_ref[...], 0.0)
        out_ref[...] = (
            jnp.dot(h2.astype(jnp.bfloat16), w3_ref[...],
                    preferred_element_type=jnp.float32) + b3_ref[...])


def prepare_dan_params(params, *, v_tile=512, b_tile=128, c_align=128):
    """One-time parameter preparation (hoisted out of the per-call hot path).

    Casts the embedding table and Linear weights to bf16, pads the final Linear to a
    lane-dense class width, and pads the vocabulary to a multiple of the vocab chunk.
    """
    emb, w1, b1, w2, b2, w3, b3 = params
    V, D = emb.shape
    C = w3.shape[1]

    v_tile = max(128, min(v_tile, _round_up(V, 128)))
    assert v_tile % 128 == 0
    V_pad = _round_up(V, v_tile)
    C_pad = _round_up(max(C, c_align), c_align)

    emb_p = jnp.zeros((V_pad, D), jnp.bfloat16).at[:V].set(emb.astype(jnp.bfloat16))
    w3_p = jnp.zeros((w3.shape[0], C_pad), jnp.bfloat16).at[:, :C].set(w3.astype(jnp.bfloat16))
    b3_p = jnp.zeros((1, C_pad), jnp.float32).at[:, :C].set(b3.astype(jnp.float32))

    return dict(
        emb=emb_p,
        w1=w1.astype(jnp.bfloat16), b1=b1.astype(jnp.float32),
        w2=w2.astype(jnp.bfloat16), b2=b2.astype(jnp.float32),
        w3=w3_p, b3=b3_p,
        vocab_size=V, num_class=C, v_tile=v_tile, b_tile=b_tile,
    )


def dan_forward(text, offsets, prepared):
    emb = prepared["emb"]
    w1, b1 = prepared["w1"], prepared["b1"]
    w2, b2 = prepared["w2"], prepared["b2"]
    w3, b3 = prepared["w3"], prepared["b3"]
    V = prepared["vocab_size"]
    C = prepared["num_class"]
    v_tile = prepared["v_tile"]

    V_pad, D = emb.shape
    H1 = w1.shape[1]
    H2 = w2.shape[1]
    C_pad = w3.shape[1]
    B = offsets.shape[0]
    T = text.shape[0]

    # Batch tiling: MXU-sized row blocks for real batches, clamped for tiny demo batches.
    B_pad8 = _round_up(max(B, 8), 8)
    b_tile = _round_up(min(prepared["b_tile"], B_pad8), 8)
    B_pad = _round_up(B_pad8, b_tile)
    T_pad = _round_up(max(T, 128), 128)

    # Per-call index columns (tiny). In production these would be produced already padded
    # by whatever builds the token stream; clip defends against OOB ids (silent, vs.
    # PyTorch which would raise).
    offsets = offsets.astype(jnp.int32)
    ends_vals = jnp.concatenate([offsets[1:], jnp.array([T], jnp.int32)])
    starts_col = jnp.zeros((B_pad, 1), jnp.int32).at[:B, 0].set(offsets)
    ends_col = jnp.zeros((B_pad, 1), jnp.int32).at[:B, 0].set(ends_vals)
    text_col = jnp.zeros((T_pad, 1), jnp.int32).at[:T, 0].set(
        jnp.clip(text.astype(jnp.int32), 0, V - 1))

    grid = (B_pad // b_tile, V_pad // v_tile)

    out = pl.pallas_call(
        dan_kernel,
        out_shape=jax.ShapeDtypeStruct((B_pad, C_pad), jnp.float32),
        grid_spec=pltpu.PrefetchScalarGridSpec(
            num_scalar_prefetch=0,
            grid=grid,
            in_specs=[
                pl.BlockSpec((T_pad, 1), lambda i, k: (0, 0)),      # text (resident)
                pl.BlockSpec((b_tile, 1), lambda i, k: (i, 0)),     # bag starts
                pl.BlockSpec((b_tile, 1), lambda i, k: (i, 0)),     # bag ends
                pl.BlockSpec((v_tile, D), lambda i, k: (k, 0)),     # emb chunk (pipelined)
                pl.BlockSpec((D, H1), lambda i, k: (0, 0)),         # w1
                pl.BlockSpec((1, H1), lambda i, k: (0, 0)),         # b1
                pl.BlockSpec((H1, H2), lambda i, k: (0, 0)),        # w2
                pl.BlockSpec((1, H2), lambda i, k: (0, 0)),         # b2
                pl.BlockSpec((H2, C_pad), lambda i, k: (0, 0)),     # w3 (pre-padded)
                pl.BlockSpec((1, C_pad), lambda i, k: (0, 0)),      # b3 (pre-padded)
            ],
            out_specs=pl.BlockSpec((b_tile, C_pad), lambda i, k: (i, 0)),
            scratch_shapes=[pltpu.VMEM((b_tile, D), jnp.float32)],
        ),
        compiler_params=pltpu.CompilerParams(
            dimension_semantics=("parallel", "arbitrary"),
            vmem_limit_bytes=32 * 1024 * 1024,
        ),
    )(text_col, starts_col, ends_col, emb, w1, b1, w2, b2, w3, b3)

    return out[:B, :C]


def dan_reference(text, offsets, params):
    """Plain-JAX reference (same bf16 parameter quantization as kernel storage)."""
    emb, w1, b1, w2, b2, w3, b3 = params
    q = lambda x: x.astype(jnp.bfloat16).astype(jnp.float32)
    emb, w1, w2, w3 = q(emb), q(w1), q(w2), q(w3)
    B = offsets.shape[0]
    T = text.shape[0]
    rows = []
    for b in range(B):
        start = int(offsets[b])
        end = int(offsets[b + 1]) if b + 1 < B else T
        toks = text[start:end]
        if end - start == 0:
            rows.append(jnp.zeros((emb.shape[1],), jnp.float32))
        else:
            rows.append(jnp.mean(emb[toks], axis=0))
    h0 = jnp.stack(rows)
    h1 = jnp.maximum(h0 @ w1 + b1[0], 0.0)
    h2 = jnp.maximum(h1 @ w2 + b2[0], 0.0)
    return h2 @ w3 + b3[0]


if __name__ == "__main__":
    # Small, module-consistent shapes.
    VOCAB = 256
    EMBED_DIM = 128
    HIDDEN = (128, 128)
    NUM_CLASS = 8
    BATCH = 4
    TOTAL_TOKENS = 32

    key = jax.random.PRNGKey(0)
    k_emb, k_w1, k_w2, k_w3, k_txt = jax.random.split(key, 5)

    # Deterministic synthetic parameters (weights stored as [in, out]).
    emb = jax.random.normal(k_emb, (VOCAB, EMBED_DIM), jnp.float32) * 0.1
    w1 = jax.random.normal(k_w1, (EMBED_DIM, HIDDEN[0]), jnp.float32) * 0.05
    b1 = jnp.zeros((1, HIDDEN[0]), jnp.float32)
    w2 = jax.random.normal(k_w2, (HIDDEN[0], HIDDEN[1]), jnp.float32) * 0.05
    b2 = jnp.full((1, HIDDEN[1]), 0.01, jnp.float32)
    w3 = jax.random.normal(k_w3, (HIDDEN[1], NUM_CLASS), jnp.float32) * 0.05
    b3 = jnp.zeros((1, NUM_CLASS), jnp.float32)
    params = (emb, w1, b1, w2, b2, w3, b3)

    # One-time prep: bf16 cast + class/vocab padding. v_tile=128 so the demo vocab (256)
    # exercises the two-chunk reduction grid (accumulate + finalize path).
    prepared = prepare_dan_params(params, v_tile=128, b_tile=128)

    # Flat token stream + bag offsets (EmbeddingBag convention: offsets[0] == 0).
    text = jax.random.randint(k_txt, (TOTAL_TOKENS,), 0, VOCAB, dtype=jnp.int32)
    offsets = jnp.array([0, 5, 12, 20], dtype=jnp.int32)

    out = dan_forward(text, offsets, prepared)
    out = jax.block_until_ready(out)

    ref = dan_reference(text, offsets, params)
    assert out.shape == (BATCH, NUM_CLASS)
    # Tolerance sized for bf16-stored parameters / activations with f32 accumulation.
    assert jnp.allclose(out, ref, atol=2e-3, rtol=2e-2), "mismatch vs reference"

    print("KERNEL_OK")
</pallas_src>

<mosaic_0001>
module attributes {stable_mosaic.version = 11 : i64} {
  func.func @dan_kernel(%arg0: i32, %arg1: i32, %arg2: memref<128x1xi32, #tpu.memory_space<vmem>>, %arg3: memref<8x1xi32, #tpu.memory_space<vmem>>, %arg4: memref<8x1xi32, #tpu.memory_space<vmem>>, %arg5: memref<128x128xbf16, #tpu.memory_space<vmem>>, %arg6: memref<128x128xbf16, #tpu.memory_space<vmem>>, %arg7: memref<1x128xf32, #tpu.memory_space<vmem>>, %arg8: memref<128x128xbf16, #tpu.memory_space<vmem>>, %arg9: memref<1x128xf32, #tpu.memory_space<vmem>>, %arg10: memref<128x128xbf16, #tpu.memory_space<vmem>>, %arg11: memref<1x128xf32, #tpu.memory_space<vmem>>, %arg12: memref<8x128xf32, #tpu.memory_space<vmem>>, %arg13: memref<8x128xf32, #tpu.memory_space<vmem>>) attributes {dimension_semantics = [#tpu.dimension_semantics<parallel>, #tpu.dimension_semantics<arbitrary>], iteration_bounds = array<i64: 1, 2>, scalar_prefetch = 0 : i64, scratch_operands = 1 : i64, tpu.core_type = #tpu.core_type<tc>, window_params = [{pipeline_mode = #tpu.pipeline_mode<synchronous>, transform_indices = @transform_0, window_bounds = array<i64: 128, 1>}, {transform_indices = @transform_1, window_bounds = array<i64: 8, 1>}, {transform_indices = @transform_2, window_bounds = array<i64: 8, 1>}, {transform_indices = @transform_3, window_bounds = array<i64: 128, 128>}, {pipeline_mode = #tpu.pipeline_mode<synchronous>, transform_indices = @transform_4, window_bounds = array<i64: 128, 128>}, {pipeline_mode = #tpu.pipeline_mode<synchronous>, transform_indices = @transform_5, window_bounds = array<i64: 1, 128>}, {pipeline_mode = #tpu.pipeline_mode<synchronous>, transform_indices = @transform_6, window_bounds = array<i64: 128, 128>}, {pipeline_mode = #tpu.pipeline_mode<synchronous>, transform_indices = @transform_7, window_bounds = array<i64: 1, 128>}, {pipeline_mode = #tpu.pipeline_mode<synchronous>, transform_indices = @transform_8, window_bounds = array<i64: 128, 128>}, {pipeline_mode = #tpu.pipeline_mode<synchronous>, transform_indices = @transform_9, window_bounds = array<i64: 1, 128>}, {transform_indices = @transform_10, window_bounds = array<i64: 8, 128>}]} {
    %c0_i32 = arith.constant 0 : i32
    %0 = arith.cmpi eq, %arg1, %c0_i32 : i32
    %1 = arith.extui %0 : i1 to i32
    %c0_i32_0 = arith.constant 0 : i32
    %2 = arith.cmpi ne, %1, %c0_i32_0 : i32
    scf.if %2 {
      %cst_14 = arith.constant 0.000000e+00 : f32
      %34 = vector.broadcast %cst_14 : f32 to vector<8x128xf32>
      %c0_15 = arith.constant 0 : index
      %c0_16 = arith.constant 0 : index
      %35 = vector.load %arg13[%c0_15, %c0_16] : memref<8x128xf32, #tpu.memory_space<vmem>>, vector<8x128xf32>
      tpu.vector_store %arg13[%c0_15, %c0_16], %34 {strides = array<i32>} : memref<8x128xf32, #tpu.memory_space<vmem>>, vector<8x128xf32>,
    } else {
    }
    %c0 = arith.constant 0 : index
    %c0_1 = arith.constant 0 : index
    %3 = vector.load %arg3[%c0, %c0_1] : memref<8x1xi32, #tpu.memory_space<vmem>>, vector<8x1xi32>
    %c0_2 = arith.constant 0 : index
    %c0_3 = arith.constant 0 : index
    %4 = vector.load %arg4[%c0_2, %c0_3] : memref<8x1xi32, #tpu.memory_space<vmem>>, vector<8x1xi32>
    %5 = tpu.iota {dimensions = array<i32: 1>} : vector<8x128xi32>
    %6 = vector.broadcast %3 : vector<8x1xi32> to vector<8x128xi32>
    %7 = arith.cmpi sge, %5, %6 : vector<8x128xi32>
    %8 = vector.broadcast %4 : vector<8x1xi32> to vector<8x128xi32>
    %9 = arith.cmpi slt, %5, %8 : vector<8x128xi32>
    %10 = arith.andi %7, %9 : vector<8x128xi1>
    %11 = arith.extui %10 : vector<8x128xi1> to vector<8x128xi32>
    %12 = arith.sitofp %11 : vector<8x128xi32> to vector<8x128xf32>
    %13 = arith.truncf %12 : vector<8x128xf32> to vector<8x128xbf16>
    %14 = tpu.iota {dimensions = array<i32: 1>} : vector<128x128xi32>
    %c128_i32 = arith.constant 128 : i32
    %15 = arith.muli %arg1, %c128_i32 : i32
    %16 = vector.broadcast %15 : i32 to vector<128x128xi32>
    %17 = arith.addi %14, %16 : vector<128x128xi32>
    %c0_4 = arith.constant 0 : index
    %c0_5 = arith.constant 0 : index
    %18 = vector.load %arg2[%c0_4, %c0_5] : memref<128x1xi32, #tpu.memory_space<vmem>>, vector<128x1xi32>
    %19 = vector.broadcast %18 : vector<128x1xi32> to vector<128x128xi32>
    %20 = arith.cmpi eq, %17, %19 : vector<128x128xi32>
    %21 = arith.extui %20 : vector<128x128xi1> to vector<128x128xi32>
    %22 = arith.sitofp %21 : vector<128x128xi32> to vector<128x128xf32>
    %23 = arith.truncf %22 : vector<128x128xf32> to vector<128x128xbf16>
    %cst = arith.constant dense<0.000000e+00> : vector<8x128xf32>
    %24 = tpu.matmul %13, %23, %cst {dimension_numbers = #tpu.dot_dimension_numbers<[1], [0], [0], [1], [0, 0, 1, 1], [], []>} : vector<8x128xbf16>, vector<128x128xbf16>, vector<8x128xf32> -> vector<8x128xf32>
    %c0_6 = arith.constant 0 : index
    %c0_7 = arith.constant 0 : index
    %25 = vector.load %arg13[%c0_6, %c0_7] : memref<8x128xf32, #tpu.memory_space<vmem>>, vector<8x128xf32>
    %26 = arith.truncf %24 : vector<8x128xf32> to vector<8x128xbf16>
    %c0_8 = arith.constant 0 : index
    %c0_9 = arith.constant 0 : index
    %27 = vector.load %arg5[%c0_8, %c0_9] : memref<128x128xbf16, #tpu.memory_space<vmem>>, vector<128x128xbf16>
    %cst_10 = arith.constant dense<0.000000e+00> : vector<8x128xf32>
    %28 = tpu.matmul %26, %27, %cst_10 {dimension_numbers = #tpu.dot_dimension_numbers<[1], [0], [0], [1], [0, 0, 1, 1], [], []>} : vector<8x128xbf16>, vector<128x128xbf16>, vector<8x128xf32> -> vector<8x128xf32>
    %29 = arith.addf %25, %28 : vector<8x128xf32>
    %c0_11 = arith.constant 0 : index
    %c0_12 = arith.constant 0 : index
    %30 = vector.load %arg13[%c0_11, %c0_12] : memref<8x128xf32, #tpu.memory_space<vmem>>, vector<8x128xf32>
    tpu.vector_store %arg13[%c0_11, %c0_12], %29 {strides = array<i32>} : memref<8x128xf32, #tpu.memory_space<vmem>>, vector<8x128xf32>,
    %c1_i32 = arith.constant 1 : i32
    %31 = arith.cmpi eq, %arg1, %c1_i32 : i32
    %32 = arith.extui %31 : i1 to i32
    %c0_i32_13 = arith.constant 0 : i32
    %33 = arith.cmpi ne, %32, %c0_i32_13 : i32
    scf.if %33 {
      %34 = arith.subi %4, %3 : vector<8x1xi32>
      %35 = arith.sitofp %34 : vector<8x1xi32> to vector<8x1xf32>
      %cst_14 = arith.constant 1.000000e+00 : f32
      %36 = vector.broadcast %cst_14 : f32 to vector<8x1xf32>
      %37 = arith.maximumf %35, %36 : vector<8x1xf32>
      %cst_15 = arith.constant 1.000000e+00 : f32
      %38 = vector.broadcast %cst_15 : f32 to vector<8x1xf32>
      %39 = arith.divf %38, %37 : vector<8x1xf32>
      %c0_16 = arith.constant 0 : index
      %c0_17 = arith.constant 0 : index
      %40 = vector.load %arg13[%c0_16, %c0_17] : memref<8x128xf32, #tpu.memory_space<vmem>>, vector<8x128xf32>
      %41 = vector.broadcast %39 : vector<8x1xf32> to vector<8x128xf32>
      %42 = arith.mulf %40, %41 : vector<8x128xf32>
      %43 = arith.truncf %42 : vector<8x128xf32> to vector<8x128xbf16>
      %c0_18 = arith.constant 0 : index
      %c0_19 = arith.constant 0 : index
      %44 = vector.load %arg6[%c0_18, %c0_19] : memref<128x128xbf16, #tpu.memory_space<vmem>>, vector<128x128xbf16>
      %cst_20 = arith.constant dense<0.000000e+00> : vector<8x128xf32>
      %45 = tpu.matmul %43, %44, %cst_20 {dimension_numbers = #tpu.dot_dimension_numbers<[1], [0], [0], [1], [0, 0, 1, 1], [], []>} : vector<8x128xbf16>, vector<128x128xbf16>, vector<8x128xf32> -> vector<8x128xf32>
      %c0_21 = arith.constant 0 : index
      %c0_22 = arith.constant 0 : index
      %46 = vector.load %arg7[%c0_21, %c0_22] : memref<1x128xf32, #tpu.memory_space<vmem>>, vector<1x128xf32>
      %47 = vector.broadcast %46 : vector<1x128xf32> to vector<8x128xf32>
      %48 = arith.addf %45, %47 : vector<8x128xf32>
      %cst_23 = arith.constant 0.000000e+00 : f32
      %49 = vector.broadcast %cst_23 : f32 to vector<8x128xf32>
      %50 = arith.maximumf %48, %49 : vector<8x128xf32>
      %51 = arith.truncf %50 : vector<8x128xf32> to vector<8x128xbf16>
      %c0_24 = arith.constant 0 : index
      %c0_25 = arith.constant 0 : index
      %52 = vector.load %arg8[%c0_24, %c0_25] : memref<128x128xbf16, #tpu.memory_space<vmem>>, vector<128x128xbf16>
      %cst_26 = arith.constant dense<0.000000e+00> : vector<8x128xf32>
      %53 = tpu.matmul %51, %52, %cst_26 {dimension_numbers = #tpu.dot_dimension_numbers<[1], [0], [0], [1], [0, 0, 1, 1], [], []>} : vector<8x128xbf16>, vector<128x128xbf16>, vector<8x128xf32> -> vector<8x128xf32>
      %c0_27 = arith.constant 0 : index
      %c0_28 = arith.constant 0 : index
      %54 = vector.load %arg9[%c0_27, %c0_28] : memref<1x128xf32, #tpu.memory_space<vmem>>, vector<1x128xf32>
      %55 = vector.broadcast %54 : vector<1x128xf32> to vector<8x128xf32>
      %56 = arith.addf %53, %55 : vector<8x128xf32>
      %cst_29 = arith.constant 0.000000e+00 : f32
      %57 = vector.broadcast %cst_29 : f32 to vector<8x128xf32>
      %58 = arith.maximumf %56, %57 : vector<8x128xf32>
      %59 = arith.truncf %58 : vector<8x128xf32> to vector<8x128xbf16>
      %c0_30 = arith.constant 0 : index
      %c0_31 = arith.constant 0 : index
      %60 = vector.load %arg10[%c0_30, %c0_31] : memref<128x128xbf16, #tpu.memory_space<vmem>>, vector<128x128xbf16>
      %cst_32 = arith.constant dense<0.000000e+00> : vector<8x128xf32>
      %61 = tpu.matmul %59, %60, %cst_32 {dimension_numbers = #tpu.dot_dimension_numbers<[1], [0], [0], [1], [0, 0, 1, 1], [], []>} : vector<8x128xbf16>, vector<128x128xbf16>, vector<8x128xf32> -> vector<8x128xf32>
      %c0_33 = arith.constant 0 : index
      %c0_34 = arith.constant 0 : index
      %62 = vector.load %arg11[%c0_33, %c0_34] : memref<1x128xf32, #tpu.memory_space<vmem>>, vector<1x128xf32>
      %63 = vector.broadcast %62 : vector<1x128xf32> to vector<8x128xf32>
      %64 = arith.addf %61, %63 : vector<8x128xf32>
      %c0_35 = arith.constant 0 : index
      %c0_36 = arith.constant 0 : index
      %65 = vector.load %arg12[%c0_35, %c0_36] : memref<8x128xf32, #tpu.memory_space<vmem>>, vector<8x128xf32>
      tpu.vector_store %arg12[%c0_35, %c0_36], %64 {strides = array<i32>} : memref<8x128xf32, #tpu.memory_space<vmem>>, vector<8x128xf32>,
    } else {
    }
    return
  }
  func.func @transform_0(%arg0: i32, %arg1: i32) -> (i32, i32) {
    %c0_i32 = arith.constant 0 : i32
    %c0_i32_0 = arith.constant 0 : i32
    %c0_i32_1 = arith.constant 0 : i32
    return %c0_i32, %c0_i32_0 : i32, i32
  }
  func.func @transform_1(%arg0: i32, %arg1: i32) -> (i32, i32) {
    %c0_i32 = arith.constant 0 : i32
    %c0_i32_0 = arith.constant 0 : i32
    return %arg0, %c0_i32 : i32, i32
  }
  func.func @transform_2(%arg0: i32, %arg1: i32) -> (i32, i32) {
    %c0_i32 = arith.constant 0 : i32
    %c0_i32_0 = arith.constant 0 : i32
    return %arg0, %c0_i32 : i32, i32
  }
  func.func @transform_3(%arg0: i32, %arg1: i32) -> (i32, i32) {
    %c0_i32 = arith.constant 0 : i32
    %c0_i32_0 = arith.constant 0 : i32
    return %arg1, %c0_i32 : i32, i32
  }
  func.func @transform_4(%arg0: i32, %arg1: i32) -> (i32, i32) {
    %c0_i32 = arith.constant 0 : i32
    %c0_i32_0 = arith.constant 0 : i32
    %c0_i32_1 = arith.constant 0 : i32
    return %c0_i32, %c0_i32_0 : i32, i32
  }
  func.func @transform_5(%arg0: i32, %arg1: i32) -> (i32, i32) {
    %c0_i32 = arith.constant 0 : i32
    %c0_i32_0 = arith.constant 0 : i32
    %c0_i32_1 = arith.constant 0 : i32
    return %c0_i32, %c0_i32_0 : i32, i32
  }
  func.func @transform_6(%arg0: i32, %arg1: i32) -> (i32, i32) {
    %c0_i32 = arith.constant 0 : i32
    %c0_i32_0 = arith.constant 0 : i32
    %c0_i32_1 = arith.constant 0 : i32
    return %c0_i32, %c0_i32_0 : i32, i32
  }
  func.func @transform_7(%arg0: i32, %arg1: i32) -> (i32, i32) {
    %c0_i32 = arith.constant 0 : i32
    %c0_i32_0 = arith.constant 0 : i32
    %c0_i32_1 = arith.constant 0 : i32
    return %c0_i32, %c0_i32_0 : i32, i32
  }
  func.func @transform_8(%arg0: i32, %arg1: i32) -> (i32, i32) {
    %c0_i32 = arith.constant 0 : i32
    %c0_i32_0 = arith.constant 0 : i32
    %c0_i32_1 = arith.constant 0 : i32
    return %c0_i32, %c0_i32_0 : i32, i32
  }
  func.func @transform_9(%arg0: i32, %arg1: i32) -> (i32, i32) {
    %c0_i32 = arith.constant 0 : i32
    %c0_i32_0 = arith.constant 0 : i32
    %c0_i32_1 = arith.constant 0 : i32
    return %c0_i32, %c0_i32_0 : i32, i32
  }
  func.func @transform_10(%arg0: i32, %arg1: i32) -> (i32, i32) {
    %c0_i32 = arith.constant 0 : i32
    %c0_i32_0 = arith.constant 0 : i32
    return %arg0, %c0_i32 : i32, i32
  }
}

</mosaic_0001>

<llo_original>
// kernel: tpu_custom_call.1
$region0: #{tpu_custom_call.1}
  #allocation0 [shape = 'u32[]', space=smem, size = 0x4, offset = 0x4, fixed_abs, tag = 'smem constant byte address 0x4 - core index']
  #allocation1 [shape = 'u32[144,128]{1,0:T(1,128)}', space=vmem, size = 0x12000, scoped, tag = 'internal scratch']
  #allocation2 [shape = 'f32[8,128]{1,0:T(8,128)}', space=vmem, size = 0x1000, scoped, tag = 'scratch operand']
  %s0 = inlined_call_operand.vmem [shape: s32[128,1], index: 0, kind: input, shape index: {}]
  %s1 = inlined_call_operand.vmem [shape: s32[8,1], index: 1, kind: input, shape index: {}]
  %s2 = inlined_call_operand.vmem [shape: s32[8,1], index: 2, kind: input, shape index: {}]
  %s3 = inlined_call_operand.vmem [shape: bf16[256,128], index: 3, kind: input, shape index: {}]
  %s4 = inlined_call_operand.hbm [shape: bf16[128,128], index: 4, kind: input, shape index: {}]
  %s5 = inlined_call_operand.vmem [shape: f32[1,128], index: 5, kind: input, shape index: {}]
  %s6 = inlined_call_operand.hbm [shape: bf16[128,128], index: 6, kind: input, shape index: {}]
  %s7 = inlined_call_operand.vmem [shape: f32[1,128], index: 7, kind: input, shape index: {}]
  %s8 = inlined_call_operand.hbm [shape: bf16[128,128], index: 8, kind: input, shape index: {}]
  %s9 = inlined_call_operand.vmem [shape: f32[1,128], index: 9, kind: input, shape index: {}]
  %s10 = inlined_call_operand.hbm [shape: f32[8,128], index: 10, kind: output, shape index: {}]
  %s11 = sld [smem:[#allocation0]]
  $region93: #{tpu_custom_call.1} parent=0
    _
  %s13 = ssub.s32 1, %s11
  %s14 = scalar_select 0, %s13, %s11
  $region1: #{tpu_custom_call.1} parent=0
    #allocation3 [shape = 'u8[32768]{0}', space=vmem, size = 0x8000, scoped, tag = 'input window, operand 4, single buffered']
    #allocation4 [shape = 's32[2]{0}', space=sflag, size = 0x8, scoped, tag = 'scoped memory for tpu_custom_call.1']
    #allocation5 [shape = 's32[2]{0}', space=sflag, size = 0x8, scoped, tag = 'scoped memory for tpu_custom_call.1']
    #allocation6 [shape = 'u8[32768]{0}', space=vmem, size = 0x8000, scoped, tag = 'input window, operand 6, single buffered']
    #allocation7 [shape = 's32[1]{0}', space=sflag, size = 0x4, scoped, tag = 'scoped memory for tpu_custom_call.1']
    #allocation8 [shape = 'u8[32768]{0}', space=vmem, size = 0x8000, scoped, tag = 'input window, operand 8, single buffered']
    #allocation9 [shape = 'u8[4096]{0}', space=vmem, size = 0x1000, scoped, tag = 'output window, operand 0, single buffered']
    %15 = vsyncpa [#allocation4], 0
    %16 = vsyncpa [#allocation7], 0
    %17 = vsyncpa [#allocation5], 0
    loop: start=0, step=1, limit=4
    $region2: #{tpu_custom_call.1} parent=1 // loop_pre_header
      _
    $region3: #{tpu_custom_call.1} parent=1 // loop_header
      %s19 = sphi 0, %s23
      %p20 = scmp.ge.s32.totalorder %s19, 4
      %s26 = sphi 0, %s38
      %s27 = sphi 0, %s34
      %s28 = sphi 0, %s26
      %s29 = sphi 0, %s27
      %s30 = sphi 0, %s28
      %s31 = sphi 0, %s29
      %s39 = sphi 0, %s39
      %s41 = sphi 0, %s39
      %s42 = sphi 0, %s41
      %s56 = sphi 0, %s42
      %s62 = sphi 0, %s64
      %s65 = sphi 0, %s62
      %s66 = sphi 0, %s65
      %s82 = sphi 0, %s66
      %s88 = sphi 0, %s90
      %s91 = sphi 0, %s88
      %s92 = sphi 0, %s91
      %s108 = sphi 0, %s92
      %s114 = sphi 0, %s116
      %s117 = sphi 0, %s114
      %s118 = sphi 0, %s117
      %s134 = sphi 0, %s118
      %s138 = sphi 0, %s138
      %s140 = sphi 0, %s138
      %s141 = sphi 0, %s140
      %s155 = sphi 0, %s141
      %s159 = sphi 0, %s159
      %s161 = sphi 0, %s159
      %s162 = sphi 0, %s161
      %s176 = sphi 0, %s162
      %s180 = sphi 0, %s180
      %s182 = sphi 0, %s180
      %s183 = sphi 0, %s182
      %s197 = sphi 0, %s183
      %s201 = sphi 0, %s201
      %s203 = sphi 0, %s201
      %s204 = sphi 0, %s203
      %s218 = sphi 0, %s204
      %s222 = sphi 0, %s222
      %s224 = sphi 0, %s222
      %s225 = sphi 0, %s224
      %s239 = sphi 0, %s225
      %s243 = sphi 0, %s243
      %s245 = sphi 0, %s243
      %s246 = sphi 0, %s245
      %s260 = sphi 0, %s246
      %s266 = sphi 0, %s268
      %s269 = sphi 0, %s266
      %s270 = sphi 0, %s269
      %s286 = sphi 0, %s270
    $region4: #{tpu_custom_call.1} parent=1 // loop_header_branch
      %22 = sbr.rel (%p20) target = $region8
    $region5: #{tpu_custom_call.1} parent=1 // loop_body
      %s24 = ssub.s32 %s19, 1
      %s25 = ssub.s32 %s19, 2
      %s32 = sadd.s32 1, %s27
      %p33 = scmp.ge.s32.totalorder %s32, 2
      %s34 = scalar_select %p33, 0, %s32
      %s35 = sadd.s32 1, %s26
      %s36 = scalar_select %p33, %s35, %s26
      %p37 = scmp.ge.s32.totalorder %s36, 1
      %s38 = scalar_select %p37, 0, %s36
      %s40 = sadd.s32 %s39, 1
      %p43 = scmp.eq.s32.totalorder %s19, 1
      %p44 = scmp.ne.s32.totalorder %s39, %s41
      %p45 = scmp.eq.s32.totalorder %s19, 0
      %p46 = por %p44, %p45
      %p47 = scmp.ne.s32.totalorder %s39, %s41
      %p48 = scmp.eq.s32.totalorder %s24, 1
      %p49 = por %p47, %p48
      %p50 = scmp.ne.s32.totalorder %s41, %s42
      %p51 = scmp.eq.s32.totalorder %s24, 0
      %p52 = por %p50, %p51
      %p53 = scmp.ne.s32.totalorder %s41, %s42
      %p54 = scmp.eq.s32.totalorder %s25, 1
      %p55 = por %p53, %p54
      %p57 = scmp.ne.s32.totalorder %s42, %s56
      %p58 = scmp.eq.s32.totalorder %s25, 0
      %p59 = por %p57, %p58
      %s60 = ssub.s32 %s26, %s38
      %p61 = scmp.eq.s32.totalorder %s60, 0
      %s63 = sadd.s32 %s62, 1
      %s64 = scalar_select %p61, %s62, %s63
      %p67 = pneg %p61
      %p68 = scmp.eq.s32.totalorder %s19, 1
      %p69 = por %p67, %p68
      %p70 = scmp.ne.s32.totalorder %s62, %s65
      %p71 = scmp.eq.s32.totalorder %s19, 0
      %p72 = por %p70, %p71
      %p73 = scmp.ne.s32.totalorder %s62, %s65
      %p74 = scmp.eq.s32.totalorder %s24, 1
      %p75 = por %p73, %p74
      %p76 = scmp.ne.s32.totalorder %s65, %s66
      %p77 = scmp.eq.s32.totalorder %s24, 0
      %p78 = por %p76, %p77
      %p79 = scmp.ne.s32.totalorder %s65, %s66
      %p80 = scmp.eq.s32.totalorder %s25, 1
      %p81 = por %p79, %p80
      %p83 = scmp.ne.s32.totalorder %s66, %s82
      %p84 = scmp.eq.s32.totalorder %s25, 0
      %p85 = por %p83, %p84
      %s86 = ssub.s32 %s26, %s38
      %p87 = scmp.eq.s32.totalorder %s86, 0
      %s89 = sadd.s32 %s88, 1
      %s90 = scalar_select %p87, %s88, %s89
      %p93 = pneg %p87
      %p94 = scmp.eq.s32.totalorder %s19, 1
      %p95 = por %p93, %p94
      %p96 = scmp.ne.s32.totalorder %s88, %s91
      %p97 = scmp.eq.s32.totalorder %s19, 0
      %p98 = por %p96, %p97
      %p99 = scmp.ne.s32.totalorder %s88, %s91
      %p100 = scmp.eq.s32.totalorder %s24, 1
      %p101 = por %p99, %p100
      %p102 = scmp.ne.s32.totalorder %s91, %s92
      %p103 = scmp.eq.s32.totalorder %s24, 0
      %p104 = por %p102, %p103
      %p105 = scmp.ne.s32.totalorder %s91, %s92
      %p106 = scmp.eq.s32.totalorder %s25, 1
      %p107 = por %p105, %p106
      %p109 = scmp.ne.s32.totalorder %s92, %s108
      %p110 = scmp.eq.s32.totalorder %s25, 0
      %p111 = por %p109, %p110
      %s112 = ssub.s32 %s27, %s34
      %p113 = scmp.eq.s32.totalorder %s112, 0
      %s115 = sadd.s32 %s114, 1
      %s116 = scalar_select %p113, %s114, %s115
      %p119 = pneg %p113
      %p120 = scmp.eq.s32.totalorder %s19, 1
      %p121 = por %p119, %p120
      %p122 = scmp.ne.s32.totalorder %s114, %s117
      %p123 = scmp.eq.s32.totalorder %s19, 0
      %p124 = por %p122, %p123
      %p125 = scmp.ne.s32.totalorder %s114, %s117
      %p126 = scmp.eq.s32.totalorder %s24, 1
      %p127 = por %p125, %p126
      %p128 = scmp.ne.s32.totalorder %s117, %s118
      %p129 = scmp.eq.s32.totalorder %s24, 0
      %p130 = por %p128, %p129
      %p131 = scmp.ne.s32.totalorder %s117, %s118
      %p132 = scmp.eq.s32.totalorder %s25, 1
      %p133 = por %p131, %p132
      %p135 = scmp.ne.s32.totalorder %s118, %s134
      %p136 = scmp.eq.s32.totalorder %s25, 0
      %p137 = por %p135, %p136
      %s139 = sadd.s32 %s138, 1
      %p142 = scmp.eq.s32.totalorder %s19, 1
      %p143 = scmp.ne.s32.totalorder %s138, %s140
      %p144 = scmp.eq.s32.totalorder %s19, 0
      %p145 = por %p143, %p144
      %p146 = scmp.ne.s32.totalorder %s138, %s140
      %p147 = scmp.eq.s32.totalorder %s24, 1
      %p148 = por %p146, %p147
      %p149 = scmp.ne.s32.totalorder %s140, %s141
      %p150 = scmp.eq.s32.totalorder %s24, 0
      %p151 = por %p149, %p150
      %p152 = scmp.ne.s32.totalorder %s140, %s141
      %p153 = scmp.eq.s32.totalorder %s25, 1
      %p154 = por %p152, %p153
      %p156 = scmp.ne.s32.totalorder %s141, %s155
      %p157 = scmp.eq.s32.totalorder %s25, 0
      %p158 = por %p156, %p157
      %s160 = sadd.s32 %s159, 1
      %p163 = scmp.eq.s32.totalorder %s19, 1
      %p164 = scmp.ne.s32.totalorder %s159, %s161
      %p165 = scmp.eq.s32.totalorder %s19, 0
      %p166 = por %p164, %p165
      %p167 = scmp.ne.s32.totalorder %s159, %s161
      %p168 = scmp.eq.s32.totalorder %s24, 1
      %p169 = por %p167, %p168
      %p170 = scmp.ne.s32.totalorder %s161, %s162
      %p171 = scmp.eq.s32.totalorder %s24, 0
      %p172 = por %p170, %p171
      %p173 = scmp.ne.s32.totalorder %s161, %s162
      %p174 = scmp.eq.s32.totalorder %s25, 1
      %p175 = por %p173, %p174
      %p177 = scmp.ne.s32.totalorder %s162, %s176
      %p178 = scmp.eq.s32.totalorder %s25, 0
      %p179 = por %p177, %p178
      %s181 = sadd.s32 %s180, 1
      %p184 = scmp.eq.s32.totalorder %s19, 1
      %p185 = scmp.ne.s32.totalorder %s180, %s182
      %p186 = scmp.eq.s32.totalorder %s19, 0
      %p187 = por %p185, %p186
      %p188 = scmp.ne.s32.totalorder %s180, %s182
      %p189 = scmp.eq.s32.totalorder %s24, 1
      %p190 = por %p188, %p189
      %p191 = scmp.ne.s32.totalorder %s182, %s183
      %p192 = scmp.eq.s32.totalorder %s24, 0
      %p193 = por %p191, %p192
      %p194 = scmp.ne.s32.totalorder %s182, %s183
      %p195 = scmp.eq.s32.totalorder %s25, 1
      %p196 = por %p194, %p195
      %p198 = scmp.ne.s32.totalorder %s183, %s197
      %p199 = scmp.eq.s32.totalorder %s25, 0
      %p200 = por %p198, %p199
      %s202 = sadd.s32 %s201, 1
      %p205 = scmp.eq.s32.totalorder %s19, 1
      %p206 = scmp.ne.s32.totalorder %s201, %s203
      %p207 = scmp.eq.s32.totalorder %s19, 0
      %p208 = por %p206, %p207
      %p209 = scmp.ne.s32.totalorder %s201, %s203
      %p210 = scmp.eq.s32.totalorder %s24, 1
      %p211 = por %p209, %p210
      %p212 = scmp.ne.s32.totalorder %s203, %s204
      %p213 = scmp.eq.s32.totalorder %s24, 0
      %p214 = por %p212, %p213
      %p215 = scmp.ne.s32.totalorder %s203, %s204
      %p216 = scmp.eq.s32.totalorder %s25, 1
      %p217 = por %p215, %p216
      %p219 = scmp.ne.s32.totalorder %s204, %s218
      %p220 = scmp.eq.s32.totalorder %s25, 0
      %p221 = por %p219, %p220
      %s223 = sadd.s32 %s222, 1
      %p226 = scmp.eq.s32.totalorder %s19, 1
      %p227 = scmp.ne.s32.totalorder %s222, %s224
      %p228 = scmp.eq.s32.totalorder %s19, 0
      %p229 = por %p227, %p228
      %p230 = scmp.ne.s32.totalorder %s222, %s224
      %p231 = scmp.eq.s32.totalorder %s24, 1
      %p232 = por %p230, %p231
      %p233 = scmp.ne.s32.totalorder %s224, %s225
      %p234 = scmp.eq.s32.totalorder %s24, 0
      %p235 = por %p233, %p234
      %p236 = scmp.ne.s32.totalorder %s224, %s225
      %p237 = scmp.eq.s32.totalorder %s25, 1
      %p238 = por %p236, %p237
      %p240 = scmp.ne.s32.totalorder %s225, %s239
      %p241 = scmp.eq.s32.totalorder %s25, 0
      %p242 = por %p240, %p241
      %s244 = sadd.s32 %s243, 1
      %p247 = scmp.eq.s32.totalorder %s19, 1
      %p248 = scmp.ne.s32.totalorder %s243, %s245
      %p249 = scmp.eq.s32.totalorder %s19, 0
      %p250 = por %p248, %p249
      %p251 = scmp.ne.s32.totalorder %s243, %s245
      %p252 = scmp.eq.s32.totalorder %s24, 1
      %p253 = por %p251, %p252
      %p254 = scmp.ne.s32.totalorder %s245, %s246
      %p255 = scmp.eq.s32.totalorder %s24, 0
      %p256 = por %p254, %p255
      %p257 = scmp.ne.s32.totalorder %s245, %s246
      %p258 = scmp.eq.s32.totalorder %s25, 1
      %p259 = por %p257, %p258
      %p261 = scmp.ne.s32.totalorder %s246, %s260
      %p262 = scmp.eq.s32.totalorder %s25, 0
      %p263 = por %p261, %p262
      %s264 = ssub.s32 %s26, %s38
      %p265 = scmp.eq.s32.totalorder %s264, 0
      %s267 = sadd.s32 %s266, 1
      %s268 = scalar_select %p265, %s266, %s267
      %p271 = pneg %p265
      %p272 = scmp.eq.s32.totalorder %s19, 1
      %p273 = por %p271, %p272
      %p274 = scmp.ne.s32.totalorder %s266, %s269
      %p275 = scmp.eq.s32.totalorder %s19, 0
      %p276 = por %p274, %p275
      %p277 = scmp.ne.s32.totalorder %s266, %s269
      %p278 = scmp.eq.s32.totalorder %s24, 1
      %p279 = por %p277, %p278
      %p280 = scmp.ne.s32.totalorder %s269, %s270
      %p281 = scmp.eq.s32.totalorder %s24, 0
      %p282 = por %p280, %p281
      %p283 = scmp.ne.s32.totalorder %s269, %s270
      %p284 = scmp.eq.s32.totalorder %s25, 1
      %p285 = por %p283, %p284
      %p287 = scmp.ne.s32.totalorder %s270, %s286
      %p288 = scmp.eq.s32.totalorder %s25, 0
      %p289 = por %p287, %p288
      %p290 = scmp.le.s32.totalorder 1, %s19
      %p291 = scmp.lt.s32.totalorder %s19, 3
      %p292 = pnand %p290, %p291
      %p293 = pneg %p292
      // Predicated region
      $region9: #{tpu_custom_call.1} parent=5 // pred_check
        _
      $region10: #{tpu_custom_call.1} parent=5 // pred_check_branch
        %295 = sbr.rel (%p292) target = $region12
      $region11: #{tpu_custom_call.1} parent=5 // pred_region
        %s296 = ssub.s32 %s19, 1
        // Predicated region
        $region13: #{tpu_custom_call.1} parent=11 // pred_check
          %p297 = pneg %p52
        $region14: #{tpu_custom_call.1} parent=11 // pred_check_branch
          %299 = sbr.rel (%p297) target = $region16
        $region15: #{tpu_custom_call.1} parent=11 // pred_region
          _
        $region16: #{tpu_custom_call.1} parent=11 // pred_fallthru
          _
        // Predicated region
        $region17: #{tpu_custom_call.1} parent=11 // pred_check
          %p300 = pneg %p78
        $region18: #{tpu_custom_call.1} parent=11 // pred_check_branch
          %302 = sbr.rel (%p300) target = $region20
        $region19: #{tpu_custom_call.1} parent=11 // pred_region
          %p303 = scmp.lt.s32.totalorder %s28, 0
          %s304 = scalar_select %p303, %s28, 0
          %s305 = smul.addr %s304, 8
          %s306 = scalar_lea.vmem %s1, %s305
        $region20: #{tpu_custom_call.1} parent=11 // pred_fallthru
          _
        // Predicated region
        $region21: #{tpu_custom_call.1} parent=11 // pred_check
          %p307 = pneg %p104
        $region22: #{tpu_custom_call.1} parent=11 // pred_check_branch
          %309 = sbr.rel (%p307) target = $region24
        $region23: #{tpu_custom_call.1} parent=11 // pred_region
          %p310 = scmp.lt.s32.totalorder %s28, 0
          %s311 = scalar_select %p310, %s28, 0
          %s312 = smul.addr %s311, 8
          %s313 = scalar_lea.vmem %s2, %s312
        $region24: #{tpu_custom_call.1} parent=11 // pred_fallthru
          _
        // Predicated region
        $region25: #{tpu_custom_call.1} parent=11 // pred_check
          %p314 = pneg %p151
        $region26: #{tpu_custom_call.1} parent=11 // pred_check_branch
          %316 = sbr.rel (%p314) target = $region28
        $region27: #{tpu_custom_call.1} parent=11 // pred_region
          %s318 = ssub.s32 1024, 1024
          %319 = vsyncadd [#allocation4], %s318
          %s320 = sshll.u32 [#allocation3], 4
          %s321 = int_to_ptr.vmem [resolvable:$true] %s320
          %326 = dma.hbm_to_vmem [thread:$0]  %s4, 1024, %s321, [#allocation4], 64, 64, 4
        $region28: #{tpu_custom_call.1} parent=11 // pred_fallthru
          _
        // Predicated region
        $region29: #{tpu_custom_call.1} parent=11 // pred_check
          %p327 = pneg %p172
        $region30: #{tpu_custom_call.1} parent=11 // pred_check_branch
          %329 = sbr.rel (%p327) target = $region32
        $region31: #{tpu_custom_call.1} parent=11 // pred_region
          _
        $region32: #{tpu_custom_call.1} parent=11 // pred_fallthru
          _
        // Predicated region
        $region33: #{tpu_custom_call.1} parent=11 // pred_check
          %p330 = pneg %p193
        $region34: #{tpu_custom_call.1} parent=11 // pred_check_branch
          %332 = sbr.rel (%p330) target = $region36
        $region35: #{tpu_custom_call.1} parent=11 // pred_region
          %s334 = ssub.s32 1024, 1024
          %335 = vsyncadd [#allocation7], %s334
          %s336 = sshll.u32 [#allocation6], 4
          %s337 = int_to_ptr.vmem [resolvable:$true] %s336
          %342 = dma.hbm_to_vmem [thread:$0]  %s6, 1024, %s337, [#allocation7], 64, 64, 4
        $region36: #{tpu_custom_call.1} parent=11 // pred_fallthru
          _
        // Predicated region
        $region37: #{tpu_custom_call.1} parent=11 // pred_check
          %p343 = pneg %p214
        $region38: #{tpu_custom_call.1} parent=11 // pred_check_branch
          %345 = sbr.rel (%p343) target = $region40
        $region39: #{tpu_custom_call.1} parent=11 // pred_region
          _
        $region40: #{tpu_custom_call.1} parent=11 // pred_fallthru
          _
        // Predicated region
        $region41: #{tpu_custom_call.1} parent=11 // pred_check
          %p346 = pneg %p235
        $region42: #{tpu_custom_call.1} parent=11 // pred_check_branch
          %348 = sbr.rel (%p346) target = $region44
        $region43: #{tpu_custom_call.1} parent=11 // pred_region
          %s350 = ssub.s32 1024, 1024
          %351 = vsyncadd [#allocation7], %s350
          %s352 = sshll.u32 [#allocation8], 4
          %s353 = int_to_ptr.vmem [resolvable:$true] %s352
          %358 = dma.hbm_to_vmem [thread:$0]  %s8, 1024, %s353, [#allocation7], 64, 64, 4
        $region44: #{tpu_custom_call.1} parent=11 // pred_fallthru
          _
        // Predicated region
        $region45: #{tpu_custom_call.1} parent=11 // pred_check
          %p359 = pneg %p256
        $region46: #{tpu_custom_call.1} parent=11 // pred_check_branch
          %361 = sbr.rel (%p359) target = $region48
        $region47: #{tpu_custom_call.1} parent=11 // pred_region
          _
        $region48: #{tpu_custom_call.1} parent=11 // pred_fallthru
          _
      $region12: #{tpu_custom_call.1} parent=5 // pred_fallthru
        _
      %p362 = scmp.lt.s32.totalorder %s19, 2
      // Predicated region
      $region49: #{tpu_custom_call.1} parent=5 // pred_check
        %p363 = pneg %p362
      $region50: #{tpu_custom_call.1} parent=5 // pred_check_branch
        %365 = sbr.rel (%p363) target = $region52
      $region51: #{tpu_custom_call.1} parent=5 // pred_region
        // Predicated region
        $region53: #{tpu_custom_call.1} parent=51 // pred_check
          %p366 = pneg %p124
        $region54: #{tpu_custom_call.1} parent=51 // pred_check_branch
          %368 = sbr.rel (%p366) target = $region56
        $region55: #{tpu_custom_call.1} parent=51 // pred_region
          %s369 = smul.u32 16, %s27
          %p370 = scmp.lt.s32.totalorder %s369, 31
          %s371 = scalar_select %p370, %s369, 31
          %s372 = smul.addr %s371, 4
          %s373 = scalar_lea.vmem %s3, %s372
          %s374 = smul.u32 16, %s27
        $region56: #{tpu_custom_call.1} parent=51 // pred_fallthru
          _
      $region52: #{tpu_custom_call.1} parent=5 // pred_fallthru
        _
      %p375 = scmp.le.s32.totalorder 1, %s19
      %p376 = scmp.lt.s32.totalorder %s19, 3
      %p377 = pnand %p375, %p376
      %p378 = pneg %p377
      // Predicated region
      $region57: #{tpu_custom_call.1} parent=5 // pred_check
        _
      $region58: #{tpu_custom_call.1} parent=5 // pred_check_branch
        %380 = sbr.rel (%p377) target = $region60
      $region59: #{tpu_custom_call.1} parent=5 // pred_region
        %s381 = ssub.s32 %s19, 1
        // Predicated region
        $region61: #{tpu_custom_call.1} parent=59 // pred_check
          %p382 = pneg %p151
        $region62: #{tpu_custom_call.1} parent=59 // pred_check_branch
          %384 = sbr.rel (%p382) target = $region64
        $region63: #{tpu_custom_call.1} parent=59 // pred_region
          %385 = dma.done [#allocation4], 1024
        $region64: #{tpu_custom_call.1} parent=59 // pred_fallthru
          _
        // Predicated region
        $region65: #{tpu_custom_call.1} parent=59 // pred_check
          %p386 = pneg %p193
        $region66: #{tpu_custom_call.1} parent=59 // pred_check_branch
          %388 = sbr.rel (%p386) target = $region68
        $region67: #{tpu_custom_call.1} parent=59 // pred_region
          %389 = dma.done [#allocation7], 1024
        $region68: #{tpu_custom_call.1} parent=59 // pred_fallthru
          _
        // Predicated region
        $region69: #{tpu_custom_call.1} parent=59 // pred_check
          %p390 = pneg %p235
        $region70: #{tpu_custom_call.1} parent=59 // pred_check_branch
          %392 = sbr.rel (%p390) target = $region72
        $region71: #{tpu_custom_call.1} parent=59 // pred_region
          %393 = dma.done [#allocation7], 1024
        $region72: #{tpu_custom_call.1} parent=59 // pred_fallthru
          _
        %p394 = pneg %p52
        %p395 = pneg %p49
        %p396 = scmp.lt.s32.totalorder %s28, 0
        %s397 = scalar_select %p396, %s28, 0
        %s398 = smul.addr %s397, 8
        %s399 = scalar_lea.vmem %s1, %s398
        %p400 = pneg %p78
        %p401 = pneg %p75
        %p402 = scmp.lt.s32.totalorder %s28, 0
        %s403 = scalar_select %p402, %s28, 0
        %s404 = smul.addr %s403, 8
        %s405 = scalar_lea.vmem %s2, %s404
        %p406 = pneg %p104
        %p407 = pneg %p101
        %s408 = smul.u32 16, %s29
        %p409 = scmp.lt.s32.totalorder %s408, 31
        %s410 = scalar_select %p409, %s408, 31
        %s411 = smul.addr %s410, 4
        %s412 = scalar_lea.vmem %s3, %s411
        %p413 = pneg %p130
        %p414 = pneg %p127
        %p415 = pneg %p151
        %p416 = pneg %p148
        %p417 = pneg %p172
        %p418 = pneg %p169
        %p419 = pneg %p193
        %p420 = pneg %p190
        %p421 = pneg %p214
        %p422 = pneg %p211
        %p423 = pneg %p235
        %p424 = pneg %p232
        %p425 = pneg %p256
        %p426 = pneg %p253
        %p427 = pneg %p282
        %p428 = pneg %p279
        %p429 = scmp.lt.s32.totalorder %s28, 0
        %s430 = scalar_select %p429, %s28, 0
        %s431 = smul.addr %s430, 8
        %s432 = scalar_lea.vmem %s1, %s431
        %p433 = scmp.lt.s32.totalorder %s28, 0
        %s434 = scalar_select %p433, %s28, 0
        %s435 = smul.addr %s434, 8
        %s436 = scalar_lea.vmem %s2, %s435
        %s437 = smul.u32 16, %s29
        %p438 = scmp.lt.s32.totalorder %s437, 31
        %s439 = scalar_select %p438, %s437, 31
        %s440 = smul.addr %s439, 4
        %s441 = scalar_lea.vmem %s3, %s440
        %s442 = smul.u32 16, %s29
        %p444 = scmp.eq.s32.totalorder %s29, 0
        // Predicated region
        $region73: #{tpu_custom_call.1} parent=59 // pred_check
          %p445 = pneg %p444
        $region74: #{tpu_custom_call.1} parent=59 // pred_check_branch
          %447 = sbr.rel (%p445) target = $region76
        $region75: #{tpu_custom_call.1} parent=59 // pred_region
          %448 = vst [vmem:[#allocation2] sm:$0xff] 0.0
        $region76: #{tpu_custom_call.1} parent=59 // pred_fallthru
          _
        %v449 = vld [vmem:[%s432] sm:$0xff]
        %v450 = vld [vmem:[%s436] sm:$0xff]
        %v451 = vlaneseq
        %v452 = vand.u32 %v451, 127
        %453 = vset.pattern.permute.xlu0 0
        %454 = vperm.xlu0 %453, %v449
        %v455 = vpop.permute.xlu0 %454
        %vm456 = vcmp.ge.s32.totalorder %v452, %v455
        %457 = vset.pattern.permute.xlu0 0
        %458 = vperm.xlu0 %457, %v450
        %v459 = vpop.permute.xlu0 %458
        %vm460 = vcmp.lt.s32.totalorder %v452, %v459
        %vm461 = vmand %vm456, %vm460
        %v462 = vsel %vm461, 1, 0
        %v463 = vcvt.s32.f32 %v462
        %v464 = vpack.c.bf16 %v463, %v463
        %s465 = smul.u32 %s29, 128
        %v466 = vstv %s465
        %v467 = vadd.s32 %v452, %v466
        %v468 = vld [vmem:[%s0] sm:$0xff]
        %v469 = vld [vmem:[%s0 + $0x8] sm:$0xff]
        %v470 = vld [vmem:[%s0 + $0x10] sm:$0xff]
        %v471 = vld [vmem:[%s0 + $0x18] sm:$0xff]
        %v472 = vld [vmem:[%s0 + $0x20] sm:$0xff]
        %v473 = vld [vmem:[%s0 + $0x28] sm:$0xff]
        %v474 = vld [vmem:[%s0 + $0x30] sm:$0xff]
        %v475 = vld [vmem:[%s0 + $0x38] sm:$0xff]
        %v476 = vld [vmem:[%s0 + $0x40] sm:$0xff]
        %v477 = vld [vmem:[%s0 + $0x48] sm:$0xff]
        %v478 = vld [vmem:[%s0 + $0x50] sm:$0xff]
        %v479 = vld [vmem:[%s0 + $0x58] sm:$0xff]
        %v480 = vld [vmem:[%s0 + $0x60] sm:$0xff]
        %v481 = vld [vmem:[%s0 + $0x68] sm:$0xff]
        %v482 = vld [vmem:[%s0 + $0x70] sm:$0xff]
        %v483 = vld [vmem:[%s0 + $0x78] sm:$0xff]
        %484 = vset.pattern.permute.xlu0 0
        %485 = vperm.xlu0 %484, %v468
        %v486 = vpop.permute.xlu0 %485
        %487 = vset.pattern.permute.xlu0 0
        %488 = vperm.xlu0 %487, %v469
        %v489 = vpop.permute.xlu0 %488
        %490 = vset.pattern.permute.xlu0 0
        %491 = vperm.xlu0 %490, %v470
        %v492 = vpop.permute.xlu0 %491
        %493 = vset.pattern.permute.xlu0 0
        %494 = vperm.xlu0 %493, %v471
        %v495 = vpop.permute.xlu0 %494
        %496 = vset.pattern.permute.xlu0 0
        %497 = vperm.xlu0 %496, %v472
        %v498 = vpop.permute.xlu0 %497
        %499 = vset.pattern.permute.xlu0 0
        %500 = vperm.xlu0 %499, %v473
        %v501 = vpop.permute.xlu0 %500
        %502 = vset.pattern.permute.xlu0 0
        %503 = vperm.xlu0 %502, %v474
        %v504 = vpop.permute.xlu0 %503
        %505 = vset.pattern.permute.xlu0 0
        %506 = vperm.xlu0 %505, %v475
        %v507 = vpop.permute.xlu0 %506
        %508 = vset.pattern.permute.xlu0 0
        %509 = vperm.xlu0 %508, %v476
        %v510 = vpop.permute.xlu0 %509
        %511 = vset.pattern.permute.xlu0 0
        %512 = vperm.xlu0 %511, %v477
        %v513 = vpop.permute.xlu0 %512
        %514 = vset.pattern.permute.xlu0 0
        %515 = vperm.xlu0 %514, %v478
        %v516 = vpop.permute.xlu0 %515
        %517 = vset.pattern.permute.xlu0 0
        %518 = vperm.xlu0 %517, %v479
        %v519 = vpop.permute.xlu0 %518
        %520 = vset.pattern.permute.xlu0 0
        %521 = vperm.xlu0 %520, %v480
        %v522 = vpop.permute.xlu0 %521
        %523 = vset.pattern.permute.xlu0 0
        %524 = vperm.xlu0 %523, %v481
        %v525 = vpop.permute.xlu0 %524
        %526 = vset.pattern.permute.xlu0 0
        %527 = vperm.xlu0 %526, %v482
        %v528 = vpop.permute.xlu0 %527
        %529 = vset.pattern.permute.xlu0 0
        %530 = vperm.xlu0 %529, %v483
        %v531 = vpop.permute.xlu0 %530
        %vm532 = vcmp.eq.s32.totalorder %v467, %v486
        %vm533 = vcmp.eq.s32.totalorder %v467, %v489
        %vm534 = vcmp.eq.s32.totalorder %v467, %v492
        %vm535 = vcmp.eq.s32.totalorder %v467, %v495
        %vm536 = vcmp.eq.s32.totalorder %v467, %v498
        %vm537 = vcmp.eq.s32.totalorder %v467, %v501
        %vm538 = vcmp.eq.s32.totalorder %v467, %v504
        %vm539 = vcmp.eq.s32.totalorder %v467, %v507
        %vm540 = vcmp.eq.s32.totalorder %v467, %v510
        %vm541 = vcmp.eq.s32.totalorder %v467, %v513
        %vm542 = vcmp.eq.s32.totalorder %v467, %v516
        %vm543 = vcmp.eq.s32.totalorder %v467, %v519
        %vm544 = vcmp.eq.s32.totalorder %v467, %v522
        %vm545 = vcmp.eq.s32.totalorder %v467, %v525
        %vm546 = vcmp.eq.s32.totalorder %v467, %v528
        %vm547 = vcmp.eq.s32.totalorder %v467, %v531
        %v548 = vsel %vm532, 1, 0
        %v549 = vsel %vm533, 1, 0
        %v550 = vsel %vm534, 1, 0
        %v551 = vsel %vm535, 1, 0
        %v552 = vsel %vm536, 1, 0
        %v553 = vsel %vm537, 1, 0
        %v554 = vsel %vm538, 1, 0
        %v555 = vsel %vm539, 1, 0
        %v556 = vsel %vm540, 1, 0
        %v557 = vsel %vm541, 1, 0
        %v558 = vsel %vm542, 1, 0
        %v559 = vsel %vm543, 1, 0
        %v560 = vsel %vm544, 1, 0
        %v561 = vsel %vm545, 1, 0
        %v562 = vsel %vm546, 1, 0
        %v563 = vsel %vm547, 1, 0
        %v564 = vcvt.s32.f32 %v548
        %v565 = vcvt.s32.f32 %v549
        %v566 = vcvt.s32.f32 %v550
        %v567 = vcvt.s32.f32 %v551
        %v568 = vcvt.s32.f32 %v552
        %v569 = vcvt.s32.f32 %v553
        %v570 = vcvt.s32.f32 %v554
        %v571 = vcvt.s32.f32 %v555
        %v572 = vcvt.s32.f32 %v556
        %v573 = vcvt.s32.f32 %v557
        %v574 = vcvt.s32.f32 %v558
        %v575 = vcvt.s32.f32 %v559
        %v576 = vcvt.s32.f32 %v560
        %v577 = vcvt.s32.f32 %v561
        %v578 = vcvt.s32.f32 %v562
        %v579 = vcvt.s32.f32 %v563
        %v580 = vpack.c.bf16 %v565, %v564
        %v581 = vpack.c.bf16 %v567, %v566
        %v582 = vpack.c.bf16 %v569, %v568
        %v583 = vpack.c.bf16 %v571, %v570
        %v584 = vpack.c.bf16 %v573, %v572
        %v585 = vpack.c.bf16 %v575, %v574
        %v586 = vpack.c.bf16 %v577, %v576
        %v587 = vpack.c.bf16 %v579, %v578
        %588 = vmatprep.subr.bf16.mxu0 0
        %589 = vmatpush1.bf16.msra.mxu0 %v580
        %590 = vmatprep.subr.bf16.mxu0 0
        %591 = vmatpush1.bf16.msra.mxu0 %v581
        %592 = vmatprep.subr.bf16.mxu0 0
        %593 = vmatpush1.bf16.msra.mxu0 %v582
        %594 = vmatprep.subr.bf16.mxu0 0
        %595 = vmatpush1.bf16.msra.mxu0 %v583
        %596 = vmatprep.subr.bf16.mxu0 0
        %597 = vmatpush1.bf16.msra.mxu0 %v584
        %598 = vmatprep.subr.bf16.mxu0 0
        %599 = vmatpush1.bf16.msra.mxu0 %v585
        %600 = vmatprep.subr.bf16.mxu0 0
        %601 = vmatpush1.bf16.msra.mxu0 %v586
        %602 = vmatprep.subr.bf16.mxu0 0
        %603 = vmatpush1.bf16.msra.mxu0 %v587
        %604 = vmatprep.subr.bf16.mxu0 0
        %605 = vmatpush1.bf16.msra.mxu0 0
        %606 = vmatprep.subr.bf16.mxu0 0
        %607 = vmatpush1.bf16.msra.mxu0 0
        %608 = vmatprep.subr.bf16.mxu0 0
        %609 = vmatpush1.bf16.msra.mxu0 0
        %610 = vmatprep.subr.bf16.mxu0 0
        %611 = vmatpush1.bf16.msra.mxu0 0
        %612 = vmatprep.subr.bf16.mxu0 0
        %613 = vmatpush1.bf16.msra.mxu0 0
        %614 = vmatprep.subr.bf16.mxu0 0
        %615 = vmatpush1.bf16.msra.mxu0 0
        %616 = vmatprep.subr.bf16.mxu0 0
        %617 = vmatpush1.bf16.msra.mxu0 0
        %618 = vmatprep.subr.bf16.mxu0 0
        %619 = vmatpush1.bf16.msra.mxu0 0
        %620 = vmatprep.mubr.bf16.mxu0 0
        %621 = vmatmul.mubr.bf16.gmra.mrb[0].mxu0 %v464
        %v622 = vpop.f32.mrb[0].mxu0
        %v623 = vadd.f32 0.0, %v622
        %v624 = vpop.f32.mrb[0].mxu0
        %v625 = vpop.f32.mrb[0].mxu0
        %v626 = vpop.f32.mrb[0].mxu0
        %627 = vdwg.mxu0
        %v628 = vld [vmem:[#allocation2] sm:$0xff]
        %v629 = vpack.c.bf16 %v623, %v623
        %v630 = vld [vmem:[%s441] sm:$0xf]
        %v631 = vld [vmem:[%s441 + $0x4] sm:$0xf]
        %v632 = vld [vmem:[%s441 + $0x8] sm:$0xf]
        %v633 = vld [vmem:[%s441 + $0xc] sm:$0xf]
        %v634 = vld [vmem:[%s441 + $0x10] sm:$0xf]
        %v635 = vld [vmem:[%s441 + $0x14] sm:$0xf]
        %v636 = vld [vmem:[%s441 + $0x18] sm:$0xf]
        %v637 = vld [vmem:[%s441 + $0x1c] sm:$0xf]
        %v638 = vld [vmem:[%s441 + $0x20] sm:$0xf]
        %v639 = vld [vmem:[%s441 + $0x24] sm:$0xf]
        %v640 = vld [vmem:[%s441 + $0x28] sm:$0xf]
        %v641 = vld [vmem:[%s441 + $0x2c] sm:$0xf]
        %v642 = vld [vmem:[%s441 + $0x30] sm:$0xf]
        %v643 = vld [vmem:[%s441 + $0x34] sm:$0xf]
        %v644 = vld [vmem:[%s441 + $0x38] sm:$0xf]
        %v645 = vld [vmem:[%s441 + $0x3c] sm:$0xf]
        %v662 = vunpack.c.l.b16 %v630
        %v663 = vunpack.c.l.b16 %v631
        %v664 = vunpack.c.l.b16 %v632
        %v665 = vunpack.c.l.b16 %v633
        %v666 = vunpack.c.l.b16 %v634
        %v667 = vunpack.c.l.b16 %v635
        %v668 = vunpack.c.l.b16 %v636
        %v669 = vunpack.c.l.b16 %v637
        %v670 = vunpack.c.l.b16 %v638
        %v671 = vunpack.c.l.b16 %v639
        %v672 = vunpack.c.l.b16 %v640
        %v673 = vunpack.c.l.b16 %v641
        %v674 = vunpack.c.l.b16 %v642
        %v675 = vunpack.c.l.b16 %v643
        %v676 = vunpack.c.l.b16 %v644
        %v677 = vunpack.c.l.b16 %v645
        %v678 = vpack.c.b16 %v663, %v662
        %v679 = vpack.c.b16 %v665, %v664
        %v680 = vpack.c.b16 %v667, %v666
        %v681 = vpack.c.b16 %v669, %v668
        %v682 = vpack.c.b16 %v671, %v670
        %v683 = vpack.c.b16 %v673, %v672
        %v684 = vpack.c.b16 %v675, %v674
        %v685 = vpack.c.b16 %v677, %v676
        %694 = vmatprep.subr.bf16.mxu0 0
        %695 = vmatpush1.bf16.msra.mxu0 %v678
        %696 = vmatprep.subr.bf16.mxu0 0
        %697 = vmatpush1.bf16.msra.mxu0 %v679
        %698 = vmatprep.subr.bf16.mxu0 0
        %699 = vmatpush1.bf16.msra.mxu0 %v680
        %700 = vmatprep.subr.bf16.mxu0 0
        %701 = vmatpush1.bf16.msra.mxu0 %v681
        %702 = vmatprep.subr.bf16.mxu0 0
        %703 = vmatpush1.bf16.msra.mxu0 %v682
        %704 = vmatprep.subr.bf16.mxu0 0
        %705 = vmatpush1.bf16.msra.mxu0 %v683
        %706 = vmatprep.subr.bf16.mxu0 0
        %707 = vmatpush1.bf16.msra.mxu0 %v684
        %708 = vmatprep.subr.bf16.mxu0 0
        %709 = vmatpush1.bf16.msra.mxu0 %v685
        %710 = vmatprep.subr.bf16.mxu0 0
        %711 = vmatpush1.bf16.msra.mxu0 0
        %712 = vmatprep.subr.bf16.mxu0 0
        %713 = vmatpush1.bf16.msra.mxu0 0
        %714 = vmatprep.subr.bf16.mxu0 0
        %715 = vmatpush1.bf16.msra.mxu0 0
        %716 = vmatprep.subr.bf16.mxu0 0
        %717 = vmatpush1.bf16.msra.mxu0 0
        %718 = vmatprep.subr.bf16.mxu0 0
        %719 = vmatpush1.bf16.msra.mxu0 0
        %720 = vmatprep.subr.bf16.mxu0 0
        %721 = vmatpush1.bf16.msra.mxu0 0
        %722 = vmatprep.subr.bf16.mxu0 0
        %723 = vmatpush1.bf16.msra.mxu0 0
        %724 = vmatprep.subr.bf16.mxu0 0
        %725 = vmatpush1.bf16.msra.mxu0 0
        %726 = vmatprep.mubr.bf16.mxu0 0
        %727 = vmatmul.mubr.bf16.gmra.mrb[0].mxu0 %v629
        %v728 = vpop.f32.mrb[0].mxu0
        %v729 = vadd.f32 0.0, %v728
        %v730 = vpop.f32.mrb[0].mxu0
        %v731 = vpop.f32.mrb[0].mxu0
        %v732 = vpop.f32.mrb[0].mxu0
        %733 = vdwg.mxu0
        %v734 = vadd.f32 %v628, %v729
        %735 = vst [vmem:[#allocation2] sm:$0xff] %v734
        %p736 = scmp.eq.s32.totalorder %s29, 1
        // Predicated region
        $region77: #{tpu_custom_call.1} parent=59 // pred_check
          %p737 = pneg %p736
        $region78: #{tpu_custom_call.1} parent=59 // pred_check_branch
          %739 = sbr.rel (%p737) target = $region80
        $region79: #{tpu_custom_call.1} parent=59 // pred_region
          %v740 = vsub.s32 %v450, %v449
          %v741 = vcvt.s32.f32 %v740
          %v742 = vmax.f32 %v741, 1.0
          %v743 = vrcp.pop %v742
          %v744 = vmul.f32 1.0, %v743
          %v745 = vld [vmem:[#allocation2] sm:$0xff]
          %747 = vset.pattern.permute.xlu0 0
          %748 = vperm.xlu0 %747, %v744
          %v749 = vpop.permute.xlu0 %748
          %v751 = vmul.f32 %v745, %v749
          %v752 = vpack.c.bf16 %v751, %v751
          %v753 = vld [vmem:[#allocation3] sm:$0xf]
          %v754 = vld [vmem:[#allocation3 + $0x4] sm:$0xf]
          %v755 = vld [vmem:[#allocation3 + $0x8] sm:$0xf]
          %v756 = vld [vmem:[#allocation3 + $0xc] sm:$0xf]
          %v757 = vld [vmem:[#allocation3 + $0x10] sm:$0xf]
          %v758 = vld [vmem:[#allocation3 + $0x14] sm:$0xf]
          %v759 = vld [vmem:[#allocation3 + $0x18] sm:$0xf]
          %v760 = vld [vmem:[#allocation3 + $0x1c] sm:$0xf]
          %v761 = vld [vmem:[#allocation3 + $0x20] sm:$0xf]
          %v762 = vld [vmem:[#allocation3 + $0x24] sm:$0xf]
          %v763 = vld [vmem:[#allocation3 + $0x28] sm:$0xf]
          %v764 = vld [vmem:[#allocation3 + $0x2c] sm:$0xf]
          %v765 = vld [vmem:[#allocation3 + $0x30] sm:$0xf]
          %v766 = vld [vmem:[#allocation3 + $0x34] sm:$0xf]
          %v767 = vld [vmem:[#allocation3 + $0x38] sm:$0xf]
          %v768 = vld [vmem:[#allocation3 + $0x3c] sm:$0xf]
          %v769 = vld [vmem:[%s5] sm:$0x1]
          %v771 = vlaneseq
          %v772 = vshrl.u32 %v771, 7
          %v773 = vsub.s32 0, %v772
          %v774 = vrot.slane %v769, %v773
          %v792 = vunpack.c.l.b16 %v753
          %v793 = vunpack.c.l.b16 %v754
          %v794 = vunpack.c.l.b16 %v755
          %v795 = vunpack.c.l.b16 %v756
          %v796 = vunpack.c.l.b16 %v757
          %v797 = vunpack.c.l.b16 %v758
          %v798 = vunpack.c.l.b16 %v759
          %v799 = vunpack.c.l.b16 %v760
          %v800 = vunpack.c.l.b16 %v761
          %v801 = vunpack.c.l.b16 %v762
          %v802 = vunpack.c.l.b16 %v763
          %v803 = vunpack.c.l.b16 %v764
          %v804 = vunpack.c.l.b16 %v765
          %v805 = vunpack.c.l.b16 %v766
          %v806 = vunpack.c.l.b16 %v767
          %v807 = vunpack.c.l.b16 %v768
          %v808 = vpack.c.b16 %v793, %v792
          %v809 = vpack.c.b16 %v795, %v794
          %v810 = vpack.c.b16 %v797, %v796
          %v811 = vpack.c.b16 %v799, %v798
          %v812 = vpack.c.b16 %v801, %v800
          %v813 = vpack.c.b16 %v803, %v802
          %v814 = vpack.c.b16 %v805, %v804
          %v815 = vpack.c.b16 %v807, %v806
          %824 = vmatprep.subr.bf16.mxu0 0
          %825 = vmatpush1.bf16.msra.mxu0 %v808
          %826 = vmatprep.subr.bf16.mxu0 0
          %827 = vmatpush1.bf16.msra.mxu0 %v809
          %828 = vmatprep.subr.bf16.mxu0 0
          %829 = vmatpush1.bf16.msra.mxu0 %v810
          %830 = vmatprep.subr.bf16.mxu0 0
          %831 = vmatpush1.bf16.msra.mxu0 %v811
          %832 = vmatprep.subr.bf16.mxu0 0
          %833 = vmatpush1.bf16.msra.mxu0 %v812
          %834 = vmatprep.subr.bf16.mxu0 0
          %835 = vmatpush1.bf16.msra.mxu0 %v813
          %836 = vmatprep.subr.bf16.mxu0 0
          %837 = vmatpush1.bf16.msra.mxu0 %v814
          %838 = vmatprep.subr.bf16.mxu0 0
          %839 = vmatpush1.bf16.msra.mxu0 %v815
          %840 = vmatprep.subr.bf16.mxu0 0
          %841 = vmatpush1.bf16.msra.mxu0 0
          %842 = vmatprep.subr.bf16.mxu0 0
          %843 = vmatpush1.bf16.msra.mxu0 0
          %844 = vmatprep.subr.bf16.mxu0 0
          %845 = vmatpush1.bf16.msra.mxu0 0
          %846 = vmatprep.subr.bf16.mxu0 0
          %847 = vmatpush1.bf16.msra.mxu0 0
          %848 = vmatprep.subr.bf16.mxu0 0
          %849 = vmatpush1.bf16.msra.mxu0 0
          %850 = vmatprep.subr.bf16.mxu0 0
          %851 = vmatpush1.bf16.msra.mxu0 0
          %852 = vmatprep.subr.bf16.mxu0 0
          %853 = vmatpush1.bf16.msra.mxu0 0
          %854 = vmatprep.subr.bf16.mxu0 0
          %855 = vmatpush1.bf16.msra.mxu0 0
          %856 = vmatprep.mubr.bf16.mxu0 0
          %857 = vmatmul.mubr.bf16.gmra.mrb[0].mxu0 %v752
          %v858 = vpop.f32.mrb[0].mxu0
          %v859 = vadd.f32 %v774, %v858
          %v860 = vpop.f32.mrb[0].mxu0
          %v861 = vpop.f32.mrb[0].mxu0
          %v862 = vpop.f32.mrb[0].mxu0
          %863 = vdwg.mxu0
          %v864 = vmax.f32 %v859, 0.0
          %v865 = vpack.c.bf16 %v864, %v864
          %v866 = vld [vmem:[#allocation6] sm:$0xf]
          %v867 = vld [vmem:[#allocation6 + $0x4] sm:$0xf]
          %v868 = vld [vmem:[#allocation6 + $0x8] sm:$0xf]
          %v869 = vld [vmem:[#allocation6 + $0xc] sm:$0xf]
          %v870 = vld [vmem:[#allocation6 + $0x10] sm:$0xf]
          %v871 = vld [vmem:[#allocation6 + $0x14] sm:$0xf]
          %v872 = vld [vmem:[#allocation6 + $0x18] sm:$0xf]
          %v873 = vld [vmem:[#allocation6 + $0x1c] sm:$0xf]
          %v874 = vld [vmem:[#allocation6 + $0x20] sm:$0xf]
          %v875 = vld [vmem:[#allocation6 + $0x24] sm:$0xf]
          %v876 = vld [vmem:[#allocation6 + $0x28] sm:$0xf]
          %v877 = vld [vmem:[#allocation6 + $0x2c] sm:$0xf]
          %v878 = vld [vmem:[#allocation6 + $0x30] sm:$0xf]
          %v879 = vld [vmem:[#allocation6 + $0x34] sm:$0xf]
          %v880 = vld [vmem:[#allocation6 + $0x38] sm:$0xf]
          %v881 = vld [vmem:[#allocation6 + $0x3c] sm:$0xf]
          %v882 = vld [vmem:[%s7] sm:$0x1]
          %v884 = vlaneseq
          %v885 = vshrl.u32 %v884, 7
          %v886 = vsub.s32 0, %v885
          %v887 = vrot.slane %v882, %v886
          %v905 = vunpack.c.l.b16 %v866
          %v906 = vunpack.c.l.b16 %v867
          %v907 = vunpack.c.l.b16 %v868
          %v908 = vunpack.c.l.b16 %v869
          %v909 = vunpack.c.l.b16 %v870
          %v910 = vunpack.c.l.b16 %v871
          %v911 = vunpack.c.l.b16 %v872
          %v912 = vunpack.c.l.b16 %v873
          %v913 = vunpack.c.l.b16 %v874
          %v914 = vunpack.c.l.b16 %v875
          %v915 = vunpack.c.l.b16 %v876
          %v916 = vunpack.c.l.b16 %v877
          %v917 = vunpack.c.l.b16 %v878
          %v918 = vunpack.c.l.b16 %v879
          %v919 = vunpack.c.l.b16 %v880
          %v920 = vunpack.c.l.b16 %v881
          %v921 = vpack.c.b16 %v906, %v905
          %v922 = vpack.c.b16 %v908, %v907
          %v923 = vpack.c.b16 %v910, %v909
          %v924 = vpack.c.b16 %v912, %v911
          %v925 = vpack.c.b16 %v914, %v913
          %v926 = vpack.c.b16 %v916, %v915
          %v927 = vpack.c.b16 %v918, %v917
          %v928 = vpack.c.b16 %v920, %v919
          %937 = vmatprep.subr.bf16.mxu0 0
          %938 = vmatpush1.bf16.msra.mxu0 %v921
          %939 = vmatprep.subr.bf16.mxu0 0
          %940 = vmatpush1.bf16.msra.mxu0 %v922
          %941 = vmatprep.subr.bf16.mxu0 0
          %942 = vmatpush1.bf16.msra.mxu0 %v923
          %943 = vmatprep.subr.bf16.mxu0 0
          %944 = vmatpush1.bf16.msra.mxu0 %v924
          %945 = vmatprep.subr.bf16.mxu0 0
          %946 = vmatpush1.bf16.msra.mxu0 %v925
          %947 = vmatprep.subr.bf16.mxu0 0
          %948 = vmatpush1.bf16.msra.mxu0 %v926
          %949 = vmatprep.subr.bf16.mxu0 0
          %950 = vmatpush1.bf16.msra.mxu0 %v927
          %951 = vmatprep.subr.bf16.mxu0 0
          %952 = vmatpush1.bf16.msra.mxu0 %v928
          %953 = vmatprep.subr.bf16.mxu0 0
          %954 = vmatpush1.bf16.msra.mxu0 0
          %955 = vmatprep.subr.bf16.mxu0 0
          %956 = vmatpush1.bf16.msra.mxu0 0
          %957 = vmatprep.subr.bf16.mxu0 0
          %958 = vmatpush1.bf16.msra.mxu0 0
          %959 = vmatprep.subr.bf16.mxu0 0
          %960 = vmatpush1.bf16.msra.mxu0 0
          %961 = vmatprep.subr.bf16.mxu0 0
          %962 = vmatpush1.bf16.msra.mxu0 0
          %963 = vmatprep.subr.bf16.mxu0 0
          %964 = vmatpush1.bf16.msra.mxu0 0
          %965 = vmatprep.subr.bf16.mxu0 0
          %966 = vmatpush1.bf16.msra.mxu0 0
          %967 = vmatprep.subr.bf16.mxu0 0
          %968 = vmatpush1.bf16.msra.mxu0 0
          %969 = vmatprep.mubr.bf16.mxu0 0
          %970 = vmatmul.mubr.bf16.gmra.mrb[0].mxu0 %v865
          %v971 = vpop.f32.mrb[0].mxu0
          %v972 = vadd.f32 %v887, %v971
          %v973 = vpop.f32.mrb[0].mxu0
          %v974 = vpop.f32.mrb[0].mxu0
          %v975 = vpop.f32.mrb[0].mxu0
          %976 = vdwg.mxu0
          %v977 = vmax.f32 %v972, 0.0
          %v978 = vpack.c.bf16 %v977, %v977
          %v979 = vld [vmem:[#allocation8] sm:$0xf]
          %v980 = vld [vmem:[#allocation8 + $0x4] sm:$0xf]
          %v981 = vld [vmem:[#allocation8 + $0x8] sm:$0xf]
          %v982 = vld [vmem:[#allocation8 + $0xc] sm:$0xf]
          %v983 = vld [vmem:[#allocation8 + $0x10] sm:$0xf]
          %v984 = vld [vmem:[#allocation8 + $0x14] sm:$0xf]
          %v985 = vld [vmem:[#allocation8 + $0x18] sm:$0xf]
          %v986 = vld [vmem:[#allocation8 + $0x1c] sm:$0xf]
          %v987 = vld [vmem:[#allocation8 + $0x20] sm:$0xf]
          %v988 = vld [vmem:[#allocation8 + $0x24] sm:$0xf]
          %v989 = vld [vmem:[#allocation8 + $0x28] sm:$0xf]
          %v990 = vld [vmem:[#allocation8 + $0x2c] sm:$0xf]
          %v991 = vld [vmem:[#allocation8 + $0x30] sm:$0xf]
          %v992 = vld [vmem:[#allocation8 + $0x34] sm:$0xf]
          %v993 = vld [vmem:[#allocation8 + $0x38] sm:$0xf]
          %v994 = vld [vmem:[#allocation8 + $0x3c] sm:$0xf]
          %v995 = vld [vmem:[%s9] sm:$0x1]
          %v997 = vlaneseq
          %v998 = vshrl.u32 %v997, 7
          %v999 = vsub.s32 0, %v998
          %v1000 = vrot.slane %v995, %v999
          %v1018 = vunpack.c.l.b16 %v979
          %v1019 = vunpack.c.l.b16 %v980
          %v1020 = vunpack.c.l.b16 %v981
          %v1021 = vunpack.c.l.b16 %v982
          %v1022 = vunpack.c.l.b16 %v983
          %v1023 = vunpack.c.l.b16 %v984
          %v1024 = vunpack.c.l.b16 %v985
          %v1025 = vunpack.c.l.b16 %v986
          %v1026 = vunpack.c.l.b16 %v987
          %v1027 = vunpack.c.l.b16 %v988
          %v1028 = vunpack.c.l.b16 %v989
          %v1029 = vunpack.c.l.b16 %v990
          %v1030 = vunpack.c.l.b16 %v991
          %v1031 = vunpack.c.l.b16 %v992
          %v1032 = vunpack.c.l.b16 %v993
          %v1033 = vunpack.c.l.b16 %v994
          %v1034 = vpack.c.b16 %v1019, %v1018
          %v1035 = vpack.c.b16 %v1021, %v1020
          %v1036 = vpack.c.b16 %v1023, %v1022
          %v1037 = vpack.c.b16 %v1025, %v1024
          %v1038 = vpack.c.b16 %v1027, %v1026
          %v1039 = vpack.c.b16 %v1029, %v1028
          %v1040 = vpack.c.b16 %v1031, %v1030
          %v1041 = vpack.c.b16 %v1033, %v1032
          %1050 = vmatprep.subr.bf16.mxu0 0
          %1051 = vmatpush1.bf16.msra.mxu0 %v1034
          %1052 = vmatprep.subr.bf16.mxu0 0
          %1053 = vmatpush1.bf16.msra.mxu0 %v1035
          %1054 = vmatprep.subr.bf16.mxu0 0
          %1055 = vmatpush1.bf16.msra.mxu0 %v1036
          %1056 = vmatprep.subr.bf16.mxu0 0
          %1057 = vmatpush1.bf16.msra.mxu0 %v1037
          %1058 = vmatprep.subr.bf16.mxu0 0
          %1059 = vmatpush1.bf16.msra.mxu0 %v1038
          %1060 = vmatprep.subr.bf16.mxu0 0
          %1061 = vmatpush1.bf16.msra.mxu0 %v1039
          %1062 = vmatprep.subr.bf16.mxu0 0
          %1063 = vmatpush1.bf16.msra.mxu0 %v1040
          %1064 = vmatprep.subr.bf16.mxu0 0
          %1065 = vmatpush1.bf16.msra.mxu0 %v1041
          %1066 = vmatprep.subr.bf16.mxu0 0
          %1067 = vmatpush1.bf16.msra.mxu0 0
          %1068 = vmatprep.subr.bf16.mxu0 0
          %1069 = vmatpush1.bf16.msra.mxu0 0
          %1070 = vmatprep.subr.bf16.mxu0 0
          %1071 = vmatpush1.bf16.msra.mxu0 0
          %1072 = vmatprep.subr.bf16.mxu0 0
          %1073 = vmatpush1.bf16.msra.mxu0 0
          %1074 = vmatprep.subr.bf16.mxu0 0
          %1075 = vmatpush1.bf16.msra.mxu0 0
          %1076 = vmatprep.subr.bf16.mxu0 0
          %1077 = vmatpush1.bf16.msra.mxu0 0
          %1078 = vmatprep.subr.bf16.mxu0 0
          %1079 = vmatpush1.bf16.msra.mxu0 0
          %1080 = vmatprep.subr.bf16.mxu0 0
          %1081 = vmatpush1.bf16.msra.mxu0 0
          %1082 = vmatprep.mubr.bf16.mxu0 0
          %1083 = vmatmul.mubr.bf16.gmra.mrb[0].mxu0 %v978
          %v1084 = vpop.f32.mrb[0].mxu0
          %v1085 = vadd.f32 %v1000, %v1084
          %v1086 = vpop.f32.mrb[0].mxu0
          %v1087 = vpop.f32.mrb[0].mxu0
          %v1088 = vpop.f32.mrb[0].mxu0
          %1089 = vdwg.mxu0
          %1090 = vst [vmem:[#allocation9] sm:$0xff] %v1085
        $region80: #{tpu_custom_call.1} parent=59 // pred_fallthru
          _
        // Predicated region
        $region81: #{tpu_custom_call.1} parent=59 // pred_check
          %p1091 = pneg %p279
        $region82: #{tpu_custom_call.1} parent=59 // pred_check_branch
          %1093 = sbr.rel (%p1091) target = $region84
        $region83: #{tpu_custom_call.1} parent=59 // pred_region
          %s1095 = ssub.s32 128, 128
          %1096 = vsyncadd [#allocation5], %s1095
          %s1097 = smul.addr %s28, 128
          %s1098 = scalar_lea.hbm %s10, %s1097
          %s1100 = sshll.u32 [#allocation9], 4
          %s1101 = int_to_ptr.vmem [resolvable:$true] %s1100
          %1103 = dma.vmem_to_hbm [thread:$0]  %s1101, 128, %s1098, [#allocation5]
        $region84: #{tpu_custom_call.1} parent=59 // pred_fallthru
          _
        // Predicated region
        $region85: #{tpu_custom_call.1} parent=59 // pred_check
          %p1104 = pneg %p279
        $region86: #{tpu_custom_call.1} parent=59 // pred_check_branch
          %1106 = sbr.rel (%p1104) target = $region88
        $region87: #{tpu_custom_call.1} parent=59 // pred_region
          %1107 = dma.done [#allocation5], 128
        $region88: #{tpu_custom_call.1} parent=59 // pred_fallthru
          _
      $region60: #{tpu_custom_call.1} parent=5 // pred_fallthru
        _
      %p1108 = scmp.le.s32.totalorder 2, %s19
      // Predicated region
      $region89: #{tpu_custom_call.1} parent=5 // pred_check
        %p1109 = pneg %p1108
      $region90: #{tpu_custom_call.1} parent=5 // pred_check_branch
        %1111 = sbr.rel (%p1109) target = $region92
      $region91: #{tpu_custom_call.1} parent=5 // pred_region
        %s1112 = ssub.s32 %s19, 2
      $region92: #{tpu_custom_call.1} parent=5 // pred_fallthru
        _
    $region6: #{tpu_custom_call.1} parent=1 // loop_footer
      %s23 = sadd.s32 1, %s19
    $region7: #{tpu_custom_call.1} parent=1 // loop_footer_branch
      %18 = sbr.rel target = $region3
    $region8: #{tpu_custom_call.1} parent=1 // loop_exit
      _
    %1113 = vsyncpa [#allocation4], 1
    %s1114 = scalar_lea.sflag [#allocation4], 1
    %1115 = vsyncpa %s1114, 1
    %1116 = vsyncpa [#allocation7], 1
    %1117 = vsyncpa [#allocation5], 1
    %s1118 = scalar_lea.sflag [#allocation5], 1
    %1119 = vsyncpa %s1118, 1

</llo_original>
